<compile_context>
chip_gen: v7x
topology: tpu7x:2x2x1
jax: 0.10.0
libtpu: 0.0.40
codegen_flags: <defaults>
</compile_context>

<pallas_src>
import functools

import jax
import jax.numpy as jnp
from jax.experimental import pallas as pl
from jax.experimental.pallas import tpu as pltpu


_TARGET_TILE_DATA_BYTES = 2 << 20   # ~2 MiB of streamed X data per grid step
_MAX_TILE_VMEM_BYTES = 10 << 20     # per-pipeline-buffer cap (~20 MiB double-buffered)


def _lane_padded(d):
    """Last-dim size after VMEM lane padding (lanes come in 128s)."""
    return ((d + 127) // 128) * 128


def _pick_tm(N, D, itemsize):
    """Row-tile size: large enough to amortise per-step overhead, small enough
    to double-buffer in scoped VMEM on v5e/v6e/v7x, and >= 2 grid steps for
    large N so the v7x megacore can shard the single (parallel) grid axis."""
    lane_d = _lane_padded(D)
    # VMEM bytes contributed per row per pipeline buffer:
    #   lane-padded X row  +  lane-padded (tm, 1) output row (1 lane pads to 128).
    vmem_row_bytes = lane_d * itemsize + 128 * 4
    tm_data = _TARGET_TILE_DATA_BYTES // max(1, D * itemsize)
    tm_vmem = _MAX_TILE_VMEM_BYTES // max(1, vmem_row_bytes)
    tm = max(8, min(tm_data, tm_vmem))
    tm = min(tm, max(8, pl.cdiv(N, 2)))     # keep >= 2 grid steps when N allows
    tm = max(8, (tm // 8) * 8)              # sublane multiple (f32: 8; fine for bf16 too)
    if N >= 8:
        tm = min(tm, (N // 8) * 8)          # never exceed the array's row extent
    return tm


def _gaussian_kernel(abc_ref, x_ref, w_ref, o_ref, *, use_mxu):
    # abc_ref: SMEM (3,) float32        -> calibration params a, b, c
    # x_ref:   VMEM (tm, D)             -> pair-feature row tile (streamed)
    # w_ref:   VMEM (D, 1) or (1, D)    -> scorer weight (resident)
    # o_ref:   VMEM (tm, 1) float32     -> calibrated probabilities
    a = abc_ref[0]
    b = abc_ref[1]
    c = abc_ref[2]

    if use_mxu:
        # model.forward_pair on the MXU (only worth it for D >= 128).
        s = jnp.dot(x_ref[...], w_ref[...],
                    preferred_element_type=jnp.float32)                 # (tm, 1)
    else:
        # Small D: VPU multiply + lane reduction (XLU). Avoids MXU push/pop for
        # a matvec that would use <= D/256 of the systolic array.
        x = x_ref[...].astype(jnp.float32)       # upcast (v5e VPU has no bf16)
        s = jnp.sum(x * w_ref[...], axis=-1, keepdims=True)             # (tm, 1)

    # transform_score: sigmoid(a*s^2 + b*s + c), Horner form.
    z = (a * s + b) * s + c
    o_ref[...] = jax.nn.sigmoid(z).astype(o_ref.dtype)


def gaussian_forward(x, w, a, b, c, *, tm=None):
    """Fused model.forward_pair (linear pair scorer) + transform_score.

    x: (N, D) pair features (f32 or bf16), w: (D, 1) or (D,) scorer weight,
    a/b/c: python scalars / 0-d arrays. Returns (N, 1) float32 calibrated scores.
    """
    N, D = x.shape
    orig_N = N
    if N < 8:  # tiny batch: pad rows so the block stays a sublane multiple
        x = jnp.concatenate([x, jnp.zeros((8 - N, D), x.dtype)], axis=0)
        N = 8

    itemsize = jnp.dtype(x.dtype).itemsize
    if tm is None:
        tm = _pick_tm(N, D, itemsize)
    else:
        tm = max(8, (int(tm) // 8) * 8)
    num_tiles = pl.cdiv(N, tm)

    abc = jnp.asarray([a, b, c], dtype=jnp.float32)

    use_mxu = D >= 128
    if use_mxu:
        w_arg = jnp.asarray(w).astype(x.dtype).reshape(D, 1)
        w_spec = pl.BlockSpec((D, 1), lambda i: (0, 0))
    else:
        w_arg = jnp.asarray(w).astype(jnp.float32).reshape(1, D)
        w_spec = pl.BlockSpec((1, D), lambda i: (0, 0))

    # Explicit scoped-VMEM limit: double-buffered lane-padded X + output tiles
    # plus margin for the resident weight and Mosaic internal scratch.
    lane_d = _lane_padded(D)
    est = 2 * tm * (lane_d * itemsize + 128 * 4)
    vmem_limit = int(min(56 << 20, max(est + (6 << 20), 16 << 20)))

    out = pl.pallas_call(
        functools.partial(_gaussian_kernel, use_mxu=use_mxu),
        out_shape=jax.ShapeDtypeStruct((N, 1), jnp.float32),
        grid_spec=pltpu.PrefetchScalarGridSpec(
            num_scalar_prefetch=0,
            grid=(num_tiles,),
            in_specs=[
                pl.BlockSpec(memory_space=pltpu.SMEM),        # a, b, c scalars
                pl.BlockSpec((tm, D), lambda i: (i, 0)),      # X row tile (streamed)
                w_spec,                                       # w (resident)
            ],
            out_specs=pl.BlockSpec((tm, 1), lambda i: (i, 0)),
        ),
        compiler_params=pltpu.CompilerParams(
            dimension_semantics=("parallel",),
            vmem_limit_bytes=vmem_limit,
        ),
    )(abc, x, w_arg)

    return out[:orig_N]


def gaussian_forward_ref(x, w, a, b, c):
    s = x.astype(jnp.float32) @ jnp.asarray(w).astype(jnp.float32).reshape(-1, 1)
    return jax.nn.sigmoid(a * s * s + b * s + c)


if __name__ == "__main__":
    key = jax.random.PRNGKey(0)
    kx1, kw1, kx2, kw2, kx3, kw3 = jax.random.split(key, 6)

    # nn.Parameter(torch.ones(1) * 1) for each of a, b, c at init.
    a, b, c = 1.0, 1.0, 1.0

    # TODO(synk): propensities / fit_params (sklearn/clogistic LogisticRegression
    # fitting, BCE/ECE/MCE metrics) and evaluation() are host-side calibration
    # routines, not part of the forward pass; not translated.

    # 1) Small pair batch, small feature dim -> VPU matvec path, 2-step grid.
    N1, D1 = 128, 32
    x1 = jax.random.normal(kx1, (N1, D1), dtype=jnp.float32)
    w1 = jax.random.normal(kw1, (D1, 1), dtype=jnp.float32) * 0.1
    out1 = jax.block_until_ready(gaussian_forward(x1, w1, a, b, c))
    ref1 = gaussian_forward_ref(x1, w1, a, b, c)
    assert out1.shape == (N1, 1)
    assert jnp.allclose(out1, ref1, atol=1e-5, rtol=1e-5)

    # 2) N not a multiple of the tile -> partial edge blocks, no padding copy.
    N2, D2 = 203, 32
    x2 = jax.random.normal(kx2, (N2, D2), dtype=jnp.float32)
    w2 = jax.random.normal(kw2, (D2, 1), dtype=jnp.float32) * 0.1
    out2 = jax.block_until_ready(gaussian_forward(x2, w2, 0.5, 1.5, -0.25))
    ref2 = gaussian_forward_ref(x2, w2, 0.5, 1.5, -0.25)
    assert out2.shape == (N2, 1)
    assert jnp.allclose(out2, ref2, atol=1e-5, rtol=1e-5)

    # 3) Wider feature dim -> MXU matmul path.
    N3, D3 = 256, 256
    x3 = jax.random.normal(kx3, (N3, D3), dtype=jnp.float32)
    w3 = jax.random.normal(kw3, (D3, 1), dtype=jnp.float32) * 0.05
    out3 = jax.block_until_ready(gaussian_forward(x3, w3, a, b, c))
    ref3 = gaussian_forward_ref(x3, w3, a, b, c)
    assert out3.shape == (N3, 1)
    assert jnp.allclose(out3, ref3, atol=1e-4, rtol=1e-4)

    print("KERNEL_OK")
</pallas_src>

<mosaic_0001>
module attributes {stable_mosaic.version = 11 : i64} {
  func.func @_gaussian_kernel(%arg0: i32, %arg1: memref<3xf32, #tpu.memory_space<smem>>, %arg2: memref<64x32xf32, #tpu.memory_space<vmem>>, %arg3: memref<1x32xf32, #tpu.memory_space<vmem>>, %arg4: memref<64x1xf32, #tpu.memory_space<vmem>>) attributes {dimension_semantics = [#tpu.dimension_semantics<parallel>], iteration_bounds = array<i64: 2>, scalar_prefetch = 0 : i64, scratch_operands = 0 : i64, tpu.core_type = #tpu.core_type<tc>, window_params = [{transform_indices = @transform_0, window_bounds = array<i64: 3>}, {transform_indices = @transform_1, window_bounds = array<i64: 64, 32>}, {pipeline_mode = #tpu.pipeline_mode<synchronous>, transform_indices = @transform_2, window_bounds = array<i64: 1, 32>}, {transform_indices = @transform_3, window_bounds = array<i64: 64, 1>}]} {
    %c0 = arith.constant 0 : index
    %0 = memref.load %arg1[%c0] : memref<3xf32, #tpu.memory_space<smem>>
    %c1 = arith.constant 1 : index
    %1 = memref.load %arg1[%c1] : memref<3xf32, #tpu.memory_space<smem>>
    %c2 = arith.constant 2 : index
    %2 = memref.load %arg1[%c2] : memref<3xf32, #tpu.memory_space<smem>>
    %c0_0 = arith.constant 0 : index
    %c0_1 = arith.constant 0 : index
    %3 = vector.load %arg2[%c0_0, %c0_1] : memref<64x32xf32, #tpu.memory_space<vmem>>, vector<64x32xf32>
    %c0_2 = arith.constant 0 : index
    %c0_3 = arith.constant 0 : index
    %4 = vector.load %arg3[%c0_2, %c0_3] : memref<1x32xf32, #tpu.memory_space<vmem>>, vector<1x32xf32>
    %5 = vector.broadcast %4 : vector<1x32xf32> to vector<64x32xf32>
    %6 = arith.mulf %3, %5 : vector<64x32xf32>
    %cst = arith.constant dense<0.000000e+00> : vector<64xf32>
    %7 = vector.multi_reduction <add>, %6, %cst [1] : vector<64x32xf32> to vector<64xf32>
    %8 = vector.shape_cast %7 : vector<64xf32> to vector<64x1xf32>
    %9 = vector.broadcast %0 : f32 to vector<64x1xf32>
    %10 = arith.mulf %9, %8 : vector<64x1xf32>
    %11 = vector.broadcast %1 : f32 to vector<64x1xf32>
    %12 = arith.addf %10, %11 : vector<64x1xf32>
    %13 = arith.mulf %12, %8 : vector<64x1xf32>
    %14 = vector.broadcast %2 : f32 to vector<64x1xf32>
    %15 = arith.addf %13, %14 : vector<64x1xf32>
    %16 = arith.negf %15 : vector<64x1xf32>
    %17 = math.exp %16 : vector<64x1xf32>
    %cst_4 = arith.constant 1.000000e+00 : f32
    %18 = vector.broadcast %cst_4 : f32 to vector<64x1xf32>
    %19 = arith.addf %18, %17 : vector<64x1xf32>
    %20 = arith.divf %18, %19 : vector<64x1xf32>
    %c0_5 = arith.constant 0 : index
    %c0_6 = arith.constant 0 : index
    %21 = vector.load %arg4[%c0_5, %c0_6] : memref<64x1xf32, #tpu.memory_space<vmem>>, vector<64x1xf32>
    tpu.vector_store %arg4[%c0_5, %c0_6], %20 {strides = array<i32>} : memref<64x1xf32, #tpu.memory_space<vmem>>, vector<64x1xf32>,
    return
  }
  func.func @transform_0(%arg0: i32) -> i32 {
    %c0_i32 = arith.constant 0 : i32
    %c0_i32_0 = arith.constant 0 : i32
    return %c0_i32 : i32
  }
  func.func @transform_1(%arg0: i32) -> (i32, i32) {
    %c0_i32 = arith.constant 0 : i32
    %c0_i32_0 = arith.constant 0 : i32
    return %arg0, %c0_i32 : i32, i32
  }
  func.func @transform_2(%arg0: i32) -> (i32, i32) {
    %c0_i32 = arith.constant 0 : i32
    %c0_i32_0 = arith.constant 0 : i32
    %c0_i32_1 = arith.constant 0 : i32
    return %c0_i32, %c0_i32_0 : i32, i32
  }
  func.func @transform_3(%arg0: i32) -> (i32, i32) {
    %c0_i32 = arith.constant 0 : i32
    %c0_i32_0 = arith.constant 0 : i32
    return %arg0, %c0_i32 : i32, i32
  }
}

</mosaic_0001>

<llo_original>
// kernel: tpu_custom_call.1
$region0: #{tpu_custom_call.1}
  #allocation0 [shape = 'u32[]', space=smem, size = 0x4, offset = 0x4, fixed_abs, tag = 'smem constant byte address 0x4 - core index']
  #allocation1 [shape = 'u32[144,128]{1,0:T(1,128)}', space=vmem, size = 0x12000, scoped, tag = 'internal scratch']
  %s0 = inlined_call_operand.vmem [shape: f32[3], index: 0, kind: input, shape index: {}]
  %s1 = inlined_call_operand.vmem [shape: f32[128,32], index: 1, kind: input, shape index: {}]
  %s2 = inlined_call_operand.vmem [shape: f32[1,32], index: 2, kind: input, shape index: {}]
  %s3 = inlined_call_operand.vmem [shape: f32[128,1], index: 3, kind: output, shape index: {}]
  %s4 = sld [smem:[#allocation0]]
  $region49: #{tpu_custom_call.1} parent=0
    _
  %s6 = ssub.s32 1, %s4
  %s7 = scalar_select 0, %s6, %s4
  $region1: #{tpu_custom_call.1} parent=0
    #allocation2 [shape = 'u8[512]{0}', space=smem, size = 0x200, scoped, tag = 'input window, operand 0, single buffered']
    #allocation3 [shape = 's32[2]{0}', space=sflag, size = 0x8, scoped, tag = 'scoped memory for tpu_custom_call.1']
    %8 = vsyncpa [#allocation3], 0
    loop: start=0, step=1, limit=4
    $region2: #{tpu_custom_call.1} parent=1 // loop_pre_header
      _
    $region3: #{tpu_custom_call.1} parent=1 // loop_header
      %s10 = sphi 0, %s14
      %p11 = scmp.ge.s32.totalorder %s10, 4
      %s18 = sphi 0, %s18
      %s20 = sphi 0, %s18
      %s21 = sphi 0, %s20
      %s35 = sphi 0, %s21
      %s41 = sphi 0, %s43
      %s44 = sphi 0, %s41
      %s45 = sphi 0, %s44
      %s61 = sphi 0, %s45
      %s65 = sphi 0, %s65
      %s67 = sphi 0, %s65
      %s68 = sphi 0, %s67
      %s82 = sphi 0, %s68
      %s88 = sphi 0, %s90
      %s91 = sphi 0, %s88
      %s92 = sphi 0, %s91
      %s108 = sphi 0, %s92
    $region4: #{tpu_custom_call.1} parent=1 // loop_header_branch
      %13 = sbr.rel (%p11) target = $region8
    $region5: #{tpu_custom_call.1} parent=1 // loop_body
      %s15 = ssub.s32 %s10, 1
      %s16 = ssub.s32 %s10, 2
      %s17 = sadd.s32 %s10, 1
      %s19 = sadd.s32 %s18, 1
      %p22 = scmp.eq.s32.totalorder %s10, 1
      %p23 = scmp.ne.s32.totalorder %s18, %s20
      %p24 = scmp.eq.s32.totalorder %s10, 0
      %p25 = por %p23, %p24
      %p26 = scmp.ne.s32.totalorder %s18, %s20
      %p27 = scmp.eq.s32.totalorder %s15, 1
      %p28 = por %p26, %p27
      %p29 = scmp.ne.s32.totalorder %s20, %s21
      %p30 = scmp.eq.s32.totalorder %s15, 0
      %p31 = por %p29, %p30
      %p32 = scmp.ne.s32.totalorder %s20, %s21
      %p33 = scmp.eq.s32.totalorder %s16, 1
      %p34 = por %p32, %p33
      %p36 = scmp.ne.s32.totalorder %s21, %s35
      %p37 = scmp.eq.s32.totalorder %s16, 0
      %p38 = por %p36, %p37
      %s39 = ssub.s32 %s10, %s17
      %p40 = scmp.eq.s32.totalorder %s39, 0
      %s42 = sadd.s32 %s41, 1
      %s43 = scalar_select %p40, %s41, %s42
      %p46 = pneg %p40
      %p47 = scmp.eq.s32.totalorder %s10, 1
      %p48 = por %p46, %p47
      %p49 = scmp.ne.s32.totalorder %s41, %s44
      %p50 = scmp.eq.s32.totalorder %s10, 0
      %p51 = por %p49, %p50
      %p52 = scmp.ne.s32.totalorder %s41, %s44
      %p53 = scmp.eq.s32.totalorder %s15, 1
      %p54 = por %p52, %p53
      %p55 = scmp.ne.s32.totalorder %s44, %s45
      %p56 = scmp.eq.s32.totalorder %s15, 0
      %p57 = por %p55, %p56
      %p58 = scmp.ne.s32.totalorder %s44, %s45
      %p59 = scmp.eq.s32.totalorder %s16, 1
      %p60 = por %p58, %p59
      %p62 = scmp.ne.s32.totalorder %s45, %s61
      %p63 = scmp.eq.s32.totalorder %s16, 0
      %p64 = por %p62, %p63
      %s66 = sadd.s32 %s65, 1
      %p69 = scmp.eq.s32.totalorder %s10, 1
      %p70 = scmp.ne.s32.totalorder %s65, %s67
      %p71 = scmp.eq.s32.totalorder %s10, 0
      %p72 = por %p70, %p71
      %p73 = scmp.ne.s32.totalorder %s65, %s67
      %p74 = scmp.eq.s32.totalorder %s15, 1
      %p75 = por %p73, %p74
      %p76 = scmp.ne.s32.totalorder %s67, %s68
      %p77 = scmp.eq.s32.totalorder %s15, 0
      %p78 = por %p76, %p77
      %p79 = scmp.ne.s32.totalorder %s67, %s68
      %p80 = scmp.eq.s32.totalorder %s16, 1
      %p81 = por %p79, %p80
      %p83 = scmp.ne.s32.totalorder %s68, %s82
      %p84 = scmp.eq.s32.totalorder %s16, 0
      %p85 = por %p83, %p84
      %s86 = ssub.s32 %s10, %s17
      %p87 = scmp.eq.s32.totalorder %s86, 0
      %s89 = sadd.s32 %s88, 1
      %s90 = scalar_select %p87, %s88, %s89
      %p93 = pneg %p87
      %p94 = scmp.eq.s32.totalorder %s10, 1
      %p95 = por %p93, %p94
      %p96 = scmp.ne.s32.totalorder %s88, %s91
      %p97 = scmp.eq.s32.totalorder %s10, 0
      %p98 = por %p96, %p97
      %p99 = scmp.ne.s32.totalorder %s88, %s91
      %p100 = scmp.eq.s32.totalorder %s15, 1
      %p101 = por %p99, %p100
      %p102 = scmp.ne.s32.totalorder %s91, %s92
      %p103 = scmp.eq.s32.totalorder %s15, 0
      %p104 = por %p102, %p103
      %p105 = scmp.ne.s32.totalorder %s91, %s92
      %p106 = scmp.eq.s32.totalorder %s16, 1
      %p107 = por %p105, %p106
      %p109 = scmp.ne.s32.totalorder %s92, %s108
      %p110 = scmp.eq.s32.totalorder %s16, 0
      %p111 = por %p109, %p110
      %p112 = scmp.le.s32.totalorder 1, %s10
      %p113 = scmp.lt.s32.totalorder %s10, 3
      %p114 = pnand %p112, %p113
      %p115 = pneg %p114
      // Predicated region
      $region9: #{tpu_custom_call.1} parent=5 // pred_check
        _
      $region10: #{tpu_custom_call.1} parent=5 // pred_check_branch
        %117 = sbr.rel (%p114) target = $region12
      $region11: #{tpu_custom_call.1} parent=5 // pred_region
        %s118 = ssub.s32 %s10, 1
        // Predicated region
        $region13: #{tpu_custom_call.1} parent=11 // pred_check
          %p119 = pneg %p31
        $region14: #{tpu_custom_call.1} parent=11 // pred_check_branch
          %121 = sbr.rel (%p119) target = $region16
        $region15: #{tpu_custom_call.1} parent=11 // pred_region
          %s123 = ssub.s32 16, 16
          %124 = vsyncadd [#allocation3], %s123
          %s126 = sshll.u32 %s0, 4
          %s127 = int_to_ptr.vmem [resolvable:$true] %s126
          %129 = dma.vmem_to_smem %s127, 16, [#allocation2], [#allocation3]
        $region16: #{tpu_custom_call.1} parent=11 // pred_fallthru
          _
        // Predicated region
        $region17: #{tpu_custom_call.1} parent=11 // pred_check
          %p130 = pneg %p78
        $region18: #{tpu_custom_call.1} parent=11 // pred_check_branch
          %132 = sbr.rel (%p130) target = $region20
        $region19: #{tpu_custom_call.1} parent=11 // pred_region
          _
        $region20: #{tpu_custom_call.1} parent=11 // pred_fallthru
          _
      $region12: #{tpu_custom_call.1} parent=5 // pred_fallthru
        _
      %p133 = scmp.lt.s32.totalorder %s10, 2
      // Predicated region
      $region21: #{tpu_custom_call.1} parent=5 // pred_check
        %p134 = pneg %p133
      $region22: #{tpu_custom_call.1} parent=5 // pred_check_branch
        %136 = sbr.rel (%p134) target = $region24
      $region23: #{tpu_custom_call.1} parent=5 // pred_region
        // Predicated region
        $region25: #{tpu_custom_call.1} parent=23 // pred_check
          %p137 = pneg %p51
        $region26: #{tpu_custom_call.1} parent=23 // pred_check_branch
          %139 = sbr.rel (%p137) target = $region28
        $region27: #{tpu_custom_call.1} parent=23 // pred_region
          %s140 = smul.u32 8, %s10
          %p141 = scmp.lt.s32.totalorder %s140, 15
          %s142 = scalar_select %p141, %s140, 15
          %s143 = smul.addr %s142, 8
          %s144 = scalar_lea.vmem %s1, %s143
          %s145 = smul.u32 8, %s10
        $region28: #{tpu_custom_call.1} parent=23 // pred_fallthru
          _
      $region24: #{tpu_custom_call.1} parent=5 // pred_fallthru
        _
      %p146 = scmp.le.s32.totalorder 1, %s10
      %p147 = scmp.lt.s32.totalorder %s10, 3
      %p148 = pnand %p146, %p147
      %p149 = pneg %p148
      // Predicated region
      $region29: #{tpu_custom_call.1} parent=5 // pred_check
        _
      $region30: #{tpu_custom_call.1} parent=5 // pred_check_branch
        %151 = sbr.rel (%p148) target = $region32
      $region31: #{tpu_custom_call.1} parent=5 // pred_region
        %s152 = ssub.s32 %s10, 1
        // Predicated region
        $region33: #{tpu_custom_call.1} parent=31 // pred_check
          %p153 = pneg %p31
        $region34: #{tpu_custom_call.1} parent=31 // pred_check_branch
          %155 = sbr.rel (%p153) target = $region36
        $region35: #{tpu_custom_call.1} parent=31 // pred_region
          %156 = dma.done [#allocation3], 16
        $region36: #{tpu_custom_call.1} parent=31 // pred_fallthru
          _
        %157 = sfence
        %p158 = pneg %p31
        %p159 = pneg %p28
        %s160 = smul.u32 8, %s15
        %p161 = scmp.lt.s32.totalorder %s160, 15
        %s162 = scalar_select %p161, %s160, 15
        %s163 = smul.addr %s162, 8
        %s164 = scalar_lea.vmem %s1, %s163
        %p165 = pneg %p57
        %p166 = pneg %p54
        %p167 = pneg %p78
        %p168 = pneg %p75
        %p169 = pneg %p104
        %p170 = pneg %p101
        %s171 = smul.u32 8, %s15
        %p172 = scmp.lt.s32.totalorder %s171, 15
        %s173 = scalar_select %p172, %s171, 15
        %s174 = smul.addr %s173, 8
        %s175 = scalar_lea.vmem %s3, %s174
        %s176 = smul.u32 8, %s15
        %p177 = scmp.lt.s32.totalorder %s176, 15
        %s178 = scalar_select %p177, %s176, 15
        %s179 = smul.addr %s178, 8
        %s180 = scalar_lea.vmem %s1, %s179
        %s181 = smul.u32 8, %s15
        %s182 = smul.u32 8, %s15
        %p183 = scmp.lt.s32.totalorder %s182, 15
        %s184 = scalar_select %p183, %s182, 15
        %s185 = smul.addr %s184, 8
        %s186 = scalar_lea.vmem %s3, %s185
        %s187 = smul.u32 8, %s15
        %s188 = sld [smem:[#allocation2]]
        %s189 = sld [smem:[#allocation2 + $0x1]]
        %s190 = sld [smem:[#allocation2 + $0x2]]
        %v191 = vld [vmem:[%s180] sm:$0xff]
        %v192 = vld [vmem:[%s180 + $0x8] sm:$0xff]
        %v193 = vld [vmem:[%s180 + $0x10] sm:$0xff]
        %v194 = vld [vmem:[%s180 + $0x18] sm:$0xff]
        %v195 = vld [vmem:[%s180 + $0x20] sm:$0xff]
        %v196 = vld [vmem:[%s180 + $0x28] sm:$0xff]
        %v197 = vld [vmem:[%s180 + $0x30] sm:$0xff]
        %v198 = vld [vmem:[%s180 + $0x38] sm:$0xff]
        %v199 = vld [vmem:[%s2] sm:$0x1]
        %v201 = vlaneseq
        %v202 = vshrl.u32 %v201, 7
        %v203 = vsub.s32 0, %v202
        %v204 = vrot.slane %v199, %v203
        %v206 = vmul.f32 %v191, %v204
        %v207 = vmul.f32 %v192, %v204
        %v208 = vmul.f32 %v193, %v204
        %v209 = vmul.f32 %v194, %v204
        %v210 = vmul.f32 %v195, %v204
        %v211 = vmul.f32 %v196, %v204
        %v212 = vmul.f32 %v197, %v204
        %v213 = vmul.f32 %v198, %v204
        %vm214 = vcmask 261120
        %v215 = vsel %vm214, %v206, 0.0
        %216 = vadd.xlane.f32.xlu0 %v215
        %v217 = vpop.xlane.xlu0 %216
        %v218 = vsel %vm214, %v207, 0.0
        %219 = vadd.xlane.f32.xlu0 %v218
        %v220 = vpop.xlane.xlu0 %219
        %v221 = vsel %vm214, %v208, 0.0
        %222 = vadd.xlane.f32.xlu0 %v221
        %v223 = vpop.xlane.xlu0 %222
        %v224 = vsel %vm214, %v209, 0.0
        %225 = vadd.xlane.f32.xlu0 %v224
        %v226 = vpop.xlane.xlu0 %225
        %v227 = vsel %vm214, %v210, 0.0
        %228 = vadd.xlane.f32.xlu0 %v227
        %v229 = vpop.xlane.xlu0 %228
        %v230 = vsel %vm214, %v211, 0.0
        %231 = vadd.xlane.f32.xlu0 %v230
        %v232 = vpop.xlane.xlu0 %231
        %v233 = vsel %vm214, %v212, 0.0
        %234 = vadd.xlane.f32.xlu0 %v233
        %v235 = vpop.xlane.xlu0 %234
        %v236 = vsel %vm214, %v213, 0.0
        %237 = vadd.xlane.f32.xlu0 %v236
        %v238 = vpop.xlane.xlu0 %237
        %v239 = vstv %s188
        %v240 = vmul.f32 %v239, %v217
        %v241 = vmul.f32 %v239, %v220
        %v242 = vmul.f32 %v239, %v223
        %v243 = vmul.f32 %v239, %v226
        %v244 = vmul.f32 %v239, %v229
        %v245 = vmul.f32 %v239, %v232
        %v246 = vmul.f32 %v239, %v235
        %v247 = vmul.f32 %v239, %v238
        %v248 = vstv %s189
        %v249 = vadd.f32 %v240, %v248
        %v250 = vadd.f32 %v241, %v248
        %v251 = vadd.f32 %v242, %v248
        %v252 = vadd.f32 %v243, %v248
        %v253 = vadd.f32 %v244, %v248
        %v254 = vadd.f32 %v245, %v248
        %v255 = vadd.f32 %v246, %v248
        %v256 = vadd.f32 %v247, %v248
        %v257 = vmul.f32 %v249, %v217
        %v258 = vmul.f32 %v250, %v220
        %v259 = vmul.f32 %v251, %v223
        %v260 = vmul.f32 %v252, %v226
        %v261 = vmul.f32 %v253, %v229
        %v262 = vmul.f32 %v254, %v232
        %v263 = vmul.f32 %v255, %v235
        %v264 = vmul.f32 %v256, %v238
        %v265 = vstv %s190
        %v266 = vadd.f32 %v257, %v265
        %v267 = vadd.f32 %v258, %v265
        %v268 = vadd.f32 %v259, %v265
        %v269 = vadd.f32 %v260, %v265
        %v270 = vadd.f32 %v261, %v265
        %v271 = vadd.f32 %v262, %v265
        %v272 = vadd.f32 %v263, %v265
        %v273 = vadd.f32 %v264, %v265
        %v274 = vxor.u32 %v266, 2147483648
        %v275 = vxor.u32 %v267, 2147483648
        %v276 = vxor.u32 %v268, 2147483648
        %v277 = vxor.u32 %v269, 2147483648
        %v278 = vxor.u32 %v270, 2147483648
        %v279 = vxor.u32 %v271, 2147483648
        %v280 = vxor.u32 %v272, 2147483648
        %v281 = vxor.u32 %v273, 2147483648
        %v282 = vmul.f32 %v274, 1.442695
        %v283 = vpow.pop %v282
        %v284 = vmul.f32 %v275, 1.442695
        %v285 = vpow.pop %v284
        %v286 = vmul.f32 %v276, 1.442695
        %v287 = vpow.pop %v286
        %v288 = vmul.f32 %v277, 1.442695
        %v289 = vpow.pop %v288
        %v290 = vmul.f32 %v278, 1.442695
        %v291 = vpow.pop %v290
        %v292 = vmul.f32 %v279, 1.442695
        %v293 = vpow.pop %v292
        %v294 = vmul.f32 %v280, 1.442695
        %v295 = vpow.pop %v294
        %v296 = vmul.f32 %v281, 1.442695
        %v297 = vpow.pop %v296
        %v298 = vadd.f32 %v283, 1.0
        %v299 = vadd.f32 %v285, 1.0
        %v300 = vadd.f32 %v287, 1.0
        %v301 = vadd.f32 %v289, 1.0
        %v302 = vadd.f32 %v291, 1.0
        %v303 = vadd.f32 %v293, 1.0
        %v304 = vadd.f32 %v295, 1.0
        %v305 = vadd.f32 %v297, 1.0
        %v306 = vrcp.pop %v298
        %v307 = vmul.f32 1.0, %v306
        %v308 = vrcp.pop %v299
        %v309 = vmul.f32 1.0, %v308
        %v310 = vrcp.pop %v300
        %v311 = vmul.f32 1.0, %v310
        %v312 = vrcp.pop %v301
        %v313 = vmul.f32 1.0, %v312
        %v314 = vrcp.pop %v302
        %v315 = vmul.f32 1.0, %v314
        %v316 = vrcp.pop %v303
        %v317 = vmul.f32 1.0, %v316
        %v318 = vrcp.pop %v304
        %v319 = vmul.f32 1.0, %v318
        %v320 = vrcp.pop %v305
        %v321 = vmul.f32 1.0, %v320
        %vm322 = vcmask 7168
        %323 = vst.msk [vmem:[%s186] sm:$0xff] %vm322, %v307
        %324 = vst.msk [vmem:[%s186 + $0x8] sm:$0xff] %vm322, %v309
        %325 = vst.msk [vmem:[%s186 + $0x10] sm:$0xff] %vm322, %v311
        %326 = vst.msk [vmem:[%s186 + $0x18] sm:$0xff] %vm322, %v313
        %327 = vst.msk [vmem:[%s186 + $0x20] sm:$0xff] %vm322, %v315
        %328 = vst.msk [vmem:[%s186 + $0x28] sm:$0xff] %vm322, %v317
        %329 = vst.msk [vmem:[%s186 + $0x30] sm:$0xff] %vm322, %v319
        %330 = vst.msk [vmem:[%s186 + $0x38] sm:$0xff] %vm322, %v321
        %s331 = smul.u32 8, %s15
        %p332 = scmp.lt.s32.totalorder %s331, 15
        %s333 = scalar_select %p332, %s331, 15
        %s334 = smul.addr %s333, 8
        %s335 = scalar_lea.vmem %s3, %s334
        // Predicated region
        $region37: #{tpu_custom_call.1} parent=31 // pred_check
          %p336 = pneg %p101
        $region38: #{tpu_custom_call.1} parent=31 // pred_check_branch
          %338 = sbr.rel (%p336) target = $region40
        $region39: #{tpu_custom_call.1} parent=31 // pred_region
          %s339 = smul.u32 8, %s15
        $region40: #{tpu_custom_call.1} parent=31 // pred_fallthru
          _
      $region32: #{tpu_custom_call.1} parent=5 // pred_fallthru
        _
      %p340 = scmp.le.s32.totalorder 2, %s10
      // Predicated region
      $region41: #{tpu_custom_call.1} parent=5 // pred_check
        %p341 = pneg %p340
      $region42: #{tpu_custom_call.1} parent=5 // pred_check_branch
        %343 = sbr.rel (%p341) target = $region44
      $region43: #{tpu_custom_call.1} parent=5 // pred_region
        %s344 = ssub.s32 %s10, 2
        // Predicated region
        $region45: #{tpu_custom_call.1} parent=43 // pred_check
          %p345 = pneg %p107
        $region46: #{tpu_custom_call.1} parent=43 // pred_check_branch
          %347 = sbr.rel (%p345) target = $region48
        $region47: #{tpu_custom_call.1} parent=43 // pred_region
          %s348 = smul.u32 8, %s16
          %p349 = scmp.lt.s32.totalorder %s348, 15
          %s350 = scalar_select %p349, %s348, 15
          %s351 = smul.addr %s350, 8
          %s352 = scalar_lea.vmem %s3, %s351
        $region48: #{tpu_custom_call.1} parent=43 // pred_fallthru
          _
      $region44: #{tpu_custom_call.1} parent=5 // pred_fallthru
        _
    $region6: #{tpu_custom_call.1} parent=1 // loop_footer
      %s14 = sadd.s32 1, %s10
    $region7: #{tpu_custom_call.1} parent=1 // loop_footer_branch
      %9 = sbr.rel target = $region3
    $region8: #{tpu_custom_call.1} parent=1 // loop_exit
      _
    %353 = vsyncpa [#allocation3], 1
    %s354 = scalar_lea.sflag [#allocation3], 1
    %355 = vsyncpa %s354, 1

</llo_original>
